<compile_context>
chip_gen: v6e
topology: v6e:2x2x1
jax: 0.10.0
libtpu: 0.0.40
codegen_flags: <defaults>
</compile_context>

<pallas_src>
import functools

import jax
import jax.numpy as jnp
from jax import lax
from jax.experimental import pallas as pl
from jax.experimental.pallas import tpu as pltpu


def _round_up(x, m):
    return ((x + m - 1) // m) * m


def _tpu_vmem_plan():
    """(num_cores, tile VMEM budget bytes, vmem_limit_bytes or None) per generation."""
    kind = ""
    try:
        kind = jax.devices()[0].device_kind.lower()
    except Exception:
        pass
    if "v7" in kind:
        # 2 TensorCores / chip, 64 MiB physical VMEM per TC (scoped default 32 MiB).
        return 2, 40 << 20, 48 << 20
    if "v6" in kind:
        # 1 TC, 128 MiB physical (scoped default 32 MiB).
        return 1, 56 << 20, 64 << 20
    if "v5" in kind:
        # 1 TC, 128 MiB physical (scoped default 16 MiB) -> must raise the limit.
        return 1, 56 << 20, 64 << 20
    # Unknown device: stay well inside common scoped defaults.
    return 1, 12 << 20, None


def _choose_block_rows(batch, num_classes, itemsize, vmem_budget):
    """Rows per tile: multiple of the sublane packing, sized for the FULL working set."""
    sub = 8 if itemsize >= 4 else (16 if itemsize == 2 else 32)
    if batch <= sub:
        return batch                        # full-extent block (allowed)
    c_pad = _round_up(num_classes, 128)     # lane padding in VMEM
    # Per tile row:
    #  * 2x double-buffered native-dtype logits,
    #  * 2x double-buffered int32 target column (lane-padded to 128),
    #  * ~5 f32-wide in-kernel intermediates (f32 logits, shifted, exp(shifted),
    #    class-id iota/compare, one-hot select) alive alongside the pipeline buffers.
    row_bytes = 2 * c_pad * itemsize + 2 * 128 * 4 + 5 * c_pad * 4
    target = max(sub, vmem_budget // row_bytes)
    return min((batch // sub) * sub, max(sub, (target // sub) * sub))


def _focal_loss_kernel(logits_ref, targets_ref, out_ref, *, alpha, gamma,
                       total_rows, block_rows, steps_per_core):
    core = pl.program_id(0)
    step = pl.program_id(1)

    @pl.when(step == 0)
    def _():
        out_ref[...] = jnp.zeros_like(out_ref)

    logits = logits_ref[...].astype(jnp.float32)   # (TB, C), cast after the load
    tgt = targets_ref[...]                         # (TB, 1) int32
    tb, num_classes = logits.shape

    # Stable softmax pieces: shift once, reuse for the exp-sum AND the target gather.
    m = jnp.max(logits, axis=-1, keepdims=True)                      # (TB, 1)
    shifted = logits - m                                             # (TB, C)
    sum_exp = jnp.sum(jnp.exp(shifted), axis=-1, keepdims=True)      # (TB, 1)

    # Target-class shifted logit via one-hot select (no dynamic gather on TPU);
    # the compare stays in int32.
    class_ids = lax.broadcasted_iota(jnp.int32, (tb, num_classes), 1)
    logit_t_shifted = jnp.sum(jnp.where(class_ids == tgt, shifted, 0.0),
                              axis=-1, keepdims=True)                # (TB, 1)

    # ce = logsumexp(logits) - logits[target] == log(sum_exp) - shifted[target]
    ce = jnp.log(sum_exp) - logit_t_shifted                          # >= 0
    pt = jnp.exp(-ce)
    one_minus_pt = 1.0 - pt
    if gamma == 2.0:
        mod = jnp.square(one_minus_pt)     # one VALU mul instead of exp/log pow
    elif gamma == 1.0:
        mod = one_minus_pt
    elif gamma == 0.0:
        mod = jnp.ones_like(one_minus_pt)
    else:
        mod = one_minus_pt ** jnp.float32(gamma)
    focal = jnp.float32(alpha) * mod * ce                            # (TB, 1)

    # Mask rows beyond the true batch (true select, so NaN/Inf in padded rows
    # never reaches the reduction).
    tile_id = core * steps_per_core + step
    row = tile_id * block_rows + lax.broadcasted_iota(jnp.int32, (tb, 1), 0)
    focal = jnp.where(row < total_rows, focal, 0.0)

    out_ref[...] += jnp.sum(focal).reshape(1, 1, 1)


def focal_loss(inputs, targets, alpha=1.0, gamma=2.0, reduction="mean"):
    """inputs: (B, C) float logits; targets: (B,) int labels in [0, C)."""
    assert reduction in ("mean", "sum"), "only 'mean'/'sum' implemented in-kernel"
    # TODO(synk): reduction='none' (per-sample loss vector) path not implemented.
    batch, num_classes = inputs.shape
    itemsize = jnp.dtype(inputs.dtype).itemsize

    num_cores, vmem_budget, vmem_limit = _tpu_vmem_plan()
    tb = _choose_block_rows(batch, num_classes, itemsize, vmem_budget)
    n_tiles = pl.cdiv(batch, tb)
    num_cores = min(num_cores, n_tiles)
    steps = pl.cdiv(n_tiles, num_cores)
    has_surplus = num_cores * steps > n_tiles

    targets2d = targets.astype(jnp.int32).reshape(batch, 1)

    if has_surplus:
        # Surplus grid points (only possible on the multi-core split) re-read a
        # valid tile and are masked out in-kernel.
        def tile_index(core, step):
            return (jnp.minimum(core * steps + step, n_tiles - 1), 0)
    else:
        def tile_index(core, step):
            return (core * steps + step, 0)

    kernel = functools.partial(
        _focal_loss_kernel,
        alpha=float(alpha), gamma=float(gamma),
        total_rows=batch, block_rows=tb, steps_per_core=steps)

    if num_cores > 1:
        # Genuinely shard the outer axis across v7x's two TensorCores.
        dims = (pltpu.CORE_PARALLEL, pltpu.ARBITRARY)
    else:
        dims = (pltpu.ARBITRARY, pltpu.ARBITRARY)
    cp_kwargs = dict(dimension_semantics=dims)
    if vmem_limit is not None:
        cp_kwargs["vmem_limit_bytes"] = int(vmem_limit)

    partials = pl.pallas_call(
        kernel,
        out_shape=jax.ShapeDtypeStruct((num_cores, 1, 1), jnp.float32),
        grid=(num_cores, steps),
        in_specs=[
            pl.BlockSpec((tb, num_classes), tile_index),
            pl.BlockSpec((tb, 1), tile_index),
        ],
        out_specs=pl.BlockSpec((1, 1, 1), lambda core, step: (core, 0, 0)),
        compiler_params=pltpu.CompilerParams(**cp_kwargs),
    )(inputs, targets2d)

    total = jnp.sum(partials)
    if reduction == "mean":
        return total / jnp.float32(batch)
    return total


def _reference_focal_loss(inputs, targets, alpha=1.0, gamma=2.0):
    x = inputs.astype(jnp.float32)
    logz = jax.nn.logsumexp(x, axis=-1)
    logit_t = jnp.take_along_axis(x, targets[:, None], axis=-1)[:, 0]
    ce = logz - logit_t
    pt = jnp.exp(-ce)
    return jnp.mean(alpha * (1.0 - pt) ** gamma * ce)


if __name__ == "__main__":
    key = jax.random.PRNGKey(0)
    kx, kt = jax.random.split(key)
    batch, num_classes = 20, 32   # batch not a multiple of the row tile -> exercises masking
    logits = jax.random.normal(kx, (batch, num_classes), dtype=jnp.float32)
    targets = jax.random.randint(kt, (batch,), 0, num_classes, dtype=jnp.int32)

    loss = focal_loss(logits, targets, alpha=1.0, gamma=2.0, reduction="mean")
    jax.block_until_ready(loss)

    ref = _reference_focal_loss(logits, targets)
    assert jnp.allclose(loss, ref, atol=1e-5, rtol=1e-5), (loss, ref)
    print("KERNEL_OK")
</pallas_src>

<mosaic_0001>
module attributes {stable_mosaic.version = 11 : i64} {
  func.func @_focal_loss_kernel(%arg0: i32, %arg1: i32, %arg2: memref<16x32xf32, #tpu.memory_space<vmem>>, %arg3: memref<16x1xi32, #tpu.memory_space<vmem>>, %arg4: memref<1x1x1xf32, #tpu.memory_space<vmem>>) attributes {dimension_semantics = [#tpu.dimension_semantics<arbitrary>, #tpu.dimension_semantics<arbitrary>], iteration_bounds = array<i64: 1, 2>, scalar_prefetch = 0 : i64, scratch_operands = 0 : i64, tpu.core_type = #tpu.core_type<tc>, window_params = [{transform_indices = @transform_0, window_bounds = array<i64: 16, 32>}, {transform_indices = @transform_1, window_bounds = array<i64: 16, 1>}, {transform_indices = @transform_2, window_bounds = array<i64: 1, 1, 1>}]} {
    %c0_i32 = arith.constant 0 : i32
    %0 = arith.cmpi eq, %arg1, %c0_i32 : i32
    %1 = arith.extui %0 : i1 to i32
    %c0_i32_0 = arith.constant 0 : i32
    %2 = arith.cmpi ne, %1, %c0_i32_0 : i32
    scf.if %2 {
      %cst_18 = arith.constant 0.000000e+00 : f32
      %48 = vector.broadcast %cst_18 : f32 to vector<1x1x1xf32>
      %c0_19 = arith.constant 0 : index
      %c0_20 = arith.constant 0 : index
      %c0_21 = arith.constant 0 : index
      %49 = vector.load %arg4[%c0_19, %c0_20, %c0_21] : memref<1x1x1xf32, #tpu.memory_space<vmem>>, vector<1x1x1xf32>
      tpu.vector_store %arg4[%c0_19, %c0_20, %c0_21], %48 {strides = array<i32>} : memref<1x1x1xf32, #tpu.memory_space<vmem>>, vector<1x1x1xf32>,
    } else {
    }
    %c0 = arith.constant 0 : index
    %c0_1 = arith.constant 0 : index
    %3 = vector.load %arg2[%c0, %c0_1] : memref<16x32xf32, #tpu.memory_space<vmem>>, vector<16x32xf32>
    %c0_2 = arith.constant 0 : index
    %c0_3 = arith.constant 0 : index
    %4 = vector.load %arg3[%c0_2, %c0_3] : memref<16x1xi32, #tpu.memory_space<vmem>>, vector<16x1xi32>
    %cst = arith.constant dense<0xFF800000> : vector<16xf32>
    %5 = vector.multi_reduction <maximumf>, %3, %cst [1] : vector<16x32xf32> to vector<16xf32>
    %6 = vector.shape_cast %5 : vector<16xf32> to vector<16x1xf32>
    %7 = vector.broadcast %6 : vector<16x1xf32> to vector<16x32xf32>
    %8 = arith.subf %3, %7 : vector<16x32xf32>
    %9 = math.exp %8 : vector<16x32xf32>
    %cst_4 = arith.constant dense<0.000000e+00> : vector<16xf32>
    %10 = vector.multi_reduction <add>, %9, %cst_4 [1] : vector<16x32xf32> to vector<16xf32>
    %11 = vector.shape_cast %10 : vector<16xf32> to vector<16x1xf32>
    %12 = tpu.iota {dimensions = array<i32: 1>} : vector<16x32xi32>
    %13 = vector.broadcast %4 : vector<16x1xi32> to vector<16x32xi32>
    %14 = arith.cmpi eq, %12, %13 : vector<16x32xi32>
    %cst_5 = arith.constant 0.000000e+00 : f32
    %15 = vector.broadcast %cst_5 : f32 to vector<16x32xf32>
    %16 = arith.select %14, %8, %15 : vector<16x32xi1>, vector<16x32xf32>
    %cst_6 = arith.constant dense<0.000000e+00> : vector<16xf32>
    %17 = vector.multi_reduction <add>, %16, %cst_6 [1] : vector<16x32xf32> to vector<16xf32>
    %18 = vector.shape_cast %17 : vector<16xf32> to vector<16x1xf32>
    %19 = math.log %11 : vector<16x1xf32>
    %20 = arith.subf %19, %18 : vector<16x1xf32>
    %cst_7 = arith.constant 0.000000e+00 : f32
    %21 = vector.broadcast %cst_7 : f32 to vector<16x1xf32>
    %22 = arith.subf %21, %20 : vector<16x1xf32>
    %23 = math.exp %22 : vector<16x1xf32>
    %cst_8 = arith.constant 1.000000e+00 : f32
    %24 = vector.broadcast %cst_8 : f32 to vector<16x1xf32>
    %25 = arith.subf %24, %23 : vector<16x1xf32>
    %26 = arith.mulf %25, %25 : vector<16x1xf32>
    %cst_9 = arith.constant 1.000000e+00 : f32
    %27 = vector.broadcast %cst_9 : f32 to vector<16x1xf32>
    %28 = arith.mulf %27, %26 : vector<16x1xf32>
    %29 = arith.mulf %28, %20 : vector<16x1xf32>
    %c2_i32 = arith.constant 2 : i32
    %30 = arith.muli %arg0, %c2_i32 : i32
    %31 = arith.addi %30, %arg1 : i32
    %c16_i32 = arith.constant 16 : i32
    %32 = arith.muli %31, %c16_i32 : i32
    %33 = tpu.iota {dimensions = array<i32: 0>} : vector<16x1xi32>
    %34 = vector.broadcast %32 : i32 to vector<16x1xi32>
    %35 = arith.addi %34, %33 : vector<16x1xi32>
    %c20_i32 = arith.constant 20 : i32
    %36 = vector.broadcast %c20_i32 : i32 to vector<16x1xi32>
    %37 = arith.cmpi slt, %35, %36 : vector<16x1xi32>
    %cst_10 = arith.constant 0.000000e+00 : f32
    %38 = vector.broadcast %cst_10 : f32 to vector<16x1xf32>
    %39 = arith.select %37, %29, %38 : vector<16x1xi1>, vector<16x1xf32>
    %c0_11 = arith.constant 0 : index
    %c0_12 = arith.constant 0 : index
    %c0_13 = arith.constant 0 : index
    %40 = vector.load %arg4[%c0_11, %c0_12, %c0_13] : memref<1x1x1xf32, #tpu.memory_space<vmem>>, vector<1x1x1xf32>
    %41 = vector.shape_cast %39 : vector<16x1xf32> to vector<1x16x1xf32>
    %cst_14 = arith.constant dense<0.000000e+00> : vector<1xf32>
    %42 = vector.multi_reduction <add>, %41, %cst_14 [1, 2] : vector<1x16x1xf32> to vector<1xf32>
    %43 = vector.shape_cast %42 : vector<1xf32> to vector<1x1x1xf32>
    %44 = vector.extract %43[0, 0, 0] : f32 from vector<1x1x1xf32>
    %45 = vector.broadcast %44 : f32 to vector<1x1x1xf32>
    %46 = arith.addf %40, %45 : vector<1x1x1xf32>
    %c0_15 = arith.constant 0 : index
    %c0_16 = arith.constant 0 : index
    %c0_17 = arith.constant 0 : index
    %47 = vector.load %arg4[%c0_15, %c0_16, %c0_17] : memref<1x1x1xf32, #tpu.memory_space<vmem>>, vector<1x1x1xf32>
    tpu.vector_store %arg4[%c0_15, %c0_16, %c0_17], %46 {strides = array<i32>} : memref<1x1x1xf32, #tpu.memory_space<vmem>>, vector<1x1x1xf32>,
    return
  }
  func.func @transform_0(%arg0: i32, %arg1: i32) -> (i32, i32) {
    %c2_i32 = arith.constant 2 : i32
    %0 = arith.muli %arg0, %c2_i32 : i32
    %1 = arith.addi %0, %arg1 : i32
    %c0_i32 = arith.constant 0 : i32
    %c0_i32_0 = arith.constant 0 : i32
    return %1, %c0_i32 : i32, i32
  }
  func.func @transform_1(%arg0: i32, %arg1: i32) -> (i32, i32) {
    %c2_i32 = arith.constant 2 : i32
    %0 = arith.muli %arg0, %c2_i32 : i32
    %1 = arith.addi %0, %arg1 : i32
    %c0_i32 = arith.constant 0 : i32
    %c0_i32_0 = arith.constant 0 : i32
    return %1, %c0_i32 : i32, i32
  }
  func.func @transform_2(%arg0: i32, %arg1: i32) -> (i32, i32, i32) {
    %c0_i32 = arith.constant 0 : i32
    %c0_i32_0 = arith.constant 0 : i32
    %c0_i32_1 = arith.constant 0 : i32
    return %arg0, %c0_i32, %c0_i32_0 : i32, i32, i32
  }
}

</mosaic_0001>

<llo_original>
// kernel: tpu_custom_call.1
$region0: #{tpu_custom_call.1}
  #allocation0 [shape = 'u32[]', space=smem, size = 0x4, offset = 0x4, fixed_abs, tag = 'smem constant byte address 0x4 - core index']
  #allocation1 [shape = 'u32[144,128]{1,0:T(1,128)}', space=vmem, size = 0x12000, scoped, tag = 'internal scratch']
  %s0 = inlined_call_operand.vmem [shape: f32[20,32], index: 0, kind: input, shape index: {}]
  %s1 = inlined_call_operand.vmem [shape: s32[20,1], index: 1, kind: input, shape index: {}]
  %s2 = inlined_call_operand.hbm [shape: f32[1,1,1], index: 2, kind: output, shape index: {}]
  %s3 = sld [smem:[#allocation0]]
  $region45: #{tpu_custom_call.1} parent=0
    _
  %s5 = ssub.s32 1, %s3
  %s6 = scalar_select 0, %s5, %s3
  $region1: #{tpu_custom_call.1} parent=0
    #allocation2 [shape = 'u8[512]{0}', space=vmem, size = 0x400, scoped, tag = 'output window, operand 0, single buffered']
    #allocation3 [shape = 's32[2]{0}', space=sflag, size = 0x8, scoped, tag = 'scoped memory for tpu_custom_call.1']
    %7 = vsyncpa [#allocation3], 0
    loop: start=0, step=1, limit=4
    $region2: #{tpu_custom_call.1} parent=1 // loop_pre_header
      _
    $region3: #{tpu_custom_call.1} parent=1 // loop_header
      %s9 = sphi 0, %s13
      %p10 = scmp.ge.s32.totalorder %s9, 4
      %s16 = sphi 0, %s28
      %s17 = sphi 0, %s24
      %s18 = sphi 0, %s16
      %s19 = sphi 0, %s17
      %s20 = sphi 0, %s18
      %s21 = sphi 0, %s19
      %s35 = sphi 0, %s37
      %s38 = sphi 0, %s35
      %s39 = sphi 0, %s38
      %s55 = sphi 0, %s39
      %s65 = sphi 0, %s67
      %s68 = sphi 0, %s65
      %s69 = sphi 0, %s68
      %s85 = sphi 0, %s69
      %s91 = sphi 0, %s93
      %s94 = sphi 0, %s91
      %s95 = sphi 0, %s94
      %s111 = sphi 0, %s95
    $region4: #{tpu_custom_call.1} parent=1 // loop_header_branch
      %12 = sbr.rel (%p10) target = $region8
    $region5: #{tpu_custom_call.1} parent=1 // loop_body
      %s14 = ssub.s32 %s9, 1
      %s15 = ssub.s32 %s9, 2
      %s22 = sadd.s32 1, %s17
      %p23 = scmp.ge.s32.totalorder %s22, 2
      %s24 = scalar_select %p23, 0, %s22
      %s25 = sadd.s32 1, %s16
      %s26 = scalar_select %p23, %s25, %s16
      %p27 = scmp.ge.s32.totalorder %s26, 1
      %s28 = scalar_select %p27, 0, %s26
      %s29 = smul.u32 %s16, 2
      %s30 = sadd.s32 %s29, %s17
      %s31 = smul.u32 %s28, 2
      %s32 = sadd.s32 %s31, %s24
      %s33 = ssub.s32 %s30, %s32
      %p34 = scmp.eq.s32.totalorder %s33, 0
      %s36 = sadd.s32 %s35, 1
      %s37 = scalar_select %p34, %s35, %s36
      %p40 = pneg %p34
      %p41 = scmp.eq.s32.totalorder %s9, 1
      %p42 = por %p40, %p41
      %p43 = scmp.ne.s32.totalorder %s35, %s38
      %p44 = scmp.eq.s32.totalorder %s9, 0
      %p45 = por %p43, %p44
      %p46 = scmp.ne.s32.totalorder %s35, %s38
      %p47 = scmp.eq.s32.totalorder %s14, 1
      %p48 = por %p46, %p47
      %p49 = scmp.ne.s32.totalorder %s38, %s39
      %p50 = scmp.eq.s32.totalorder %s14, 0
      %p51 = por %p49, %p50
      %p52 = scmp.ne.s32.totalorder %s38, %s39
      %p53 = scmp.eq.s32.totalorder %s15, 1
      %p54 = por %p52, %p53
      %p56 = scmp.ne.s32.totalorder %s39, %s55
      %p57 = scmp.eq.s32.totalorder %s15, 0
      %p58 = por %p56, %p57
      %s59 = smul.u32 %s16, 2
      %s60 = sadd.s32 %s59, %s17
      %s61 = smul.u32 %s28, 2
      %s62 = sadd.s32 %s61, %s24
      %s63 = ssub.s32 %s60, %s62
      %p64 = scmp.eq.s32.totalorder %s63, 0
      %s66 = sadd.s32 %s65, 1
      %s67 = scalar_select %p64, %s65, %s66
      %p70 = pneg %p64
      %p71 = scmp.eq.s32.totalorder %s9, 1
      %p72 = por %p70, %p71
      %p73 = scmp.ne.s32.totalorder %s65, %s68
      %p74 = scmp.eq.s32.totalorder %s9, 0
      %p75 = por %p73, %p74
      %p76 = scmp.ne.s32.totalorder %s65, %s68
      %p77 = scmp.eq.s32.totalorder %s14, 1
      %p78 = por %p76, %p77
      %p79 = scmp.ne.s32.totalorder %s68, %s69
      %p80 = scmp.eq.s32.totalorder %s14, 0
      %p81 = por %p79, %p80
      %p82 = scmp.ne.s32.totalorder %s68, %s69
      %p83 = scmp.eq.s32.totalorder %s15, 1
      %p84 = por %p82, %p83
      %p86 = scmp.ne.s32.totalorder %s69, %s85
      %p87 = scmp.eq.s32.totalorder %s15, 0
      %p88 = por %p86, %p87
      %s89 = ssub.s32 %s16, %s28
      %p90 = scmp.eq.s32.totalorder %s89, 0
      %s92 = sadd.s32 %s91, 1
      %s93 = scalar_select %p90, %s91, %s92
      %p96 = pneg %p90
      %p97 = scmp.eq.s32.totalorder %s9, 1
      %p98 = por %p96, %p97
      %p99 = scmp.ne.s32.totalorder %s91, %s94
      %p100 = scmp.eq.s32.totalorder %s9, 0
      %p101 = por %p99, %p100
      %p102 = scmp.ne.s32.totalorder %s91, %s94
      %p103 = scmp.eq.s32.totalorder %s14, 1
      %p104 = por %p102, %p103
      %p105 = scmp.ne.s32.totalorder %s94, %s95
      %p106 = scmp.eq.s32.totalorder %s14, 0
      %p107 = por %p105, %p106
      %p108 = scmp.ne.s32.totalorder %s94, %s95
      %p109 = scmp.eq.s32.totalorder %s15, 1
      %p110 = por %p108, %p109
      %p112 = scmp.ne.s32.totalorder %s95, %s111
      %p113 = scmp.eq.s32.totalorder %s15, 0
      %p114 = por %p112, %p113
      %p115 = scmp.le.s32.totalorder 1, %s9
      %p116 = scmp.lt.s32.totalorder %s9, 3
      %p117 = pnand %p115, %p116
      %p118 = pneg %p117
      // Predicated region
      $region9: #{tpu_custom_call.1} parent=5 // pred_check
        _
      $region10: #{tpu_custom_call.1} parent=5 // pred_check_branch
        %120 = sbr.rel (%p117) target = $region12
      $region11: #{tpu_custom_call.1} parent=5 // pred_region
        %s121 = ssub.s32 %s9, 1
      $region12: #{tpu_custom_call.1} parent=5 // pred_fallthru
        _
      %p122 = scmp.lt.s32.totalorder %s9, 2
      // Predicated region
      $region13: #{tpu_custom_call.1} parent=5 // pred_check
        %p123 = pneg %p122
      $region14: #{tpu_custom_call.1} parent=5 // pred_check_branch
        %125 = sbr.rel (%p123) target = $region16
      $region15: #{tpu_custom_call.1} parent=5 // pred_region
        // Predicated region
        $region17: #{tpu_custom_call.1} parent=15 // pred_check
          %p126 = pneg %p45
        $region18: #{tpu_custom_call.1} parent=15 // pred_check_branch
          %128 = sbr.rel (%p126) target = $region20
        $region19: #{tpu_custom_call.1} parent=15 // pred_region
          %s129 = smul.u32 %s16, 2
          %s130 = sadd.s32 %s129, %s17
          %s131 = smul.u32 2, %s130
          %s132 = ssub.s32 3, %s131
          %p133 = scmp.lt.s32.totalorder %s132, 2
          %s134 = scalar_select %p133, %s132, 2
          %s135 = smul.u32 128, %s134
          %p136 = scmp.lt.s32.totalorder %s131, 2
          %s137 = scalar_select %p136, %s131, 2
          %s138 = smul.addr %s137, 8
          %s139 = scalar_lea.vmem %s0, %s138
          %s140 = smul.u32 %s16, 2
          %s141 = sadd.s32 %s140, %s17
          %s142 = smul.u32 2, %s141
          %s143 = ssub.s32 3, %s142
          %p144 = scmp.lt.s32.totalorder %s143, 2
          %s145 = scalar_select %p144, %s143, 2
          %s146 = smul.u32 128, %s145
        $region20: #{tpu_custom_call.1} parent=15 // pred_fallthru
          _
        // Predicated region
        $region21: #{tpu_custom_call.1} parent=15 // pred_check
          %p147 = pneg %p75
        $region22: #{tpu_custom_call.1} parent=15 // pred_check_branch
          %149 = sbr.rel (%p147) target = $region24
        $region23: #{tpu_custom_call.1} parent=15 // pred_region
          %s150 = smul.u32 %s16, 2
          %s151 = sadd.s32 %s150, %s17
          %s152 = smul.u32 2, %s151
          %s153 = ssub.s32 3, %s152
          %p154 = scmp.lt.s32.totalorder %s153, 2
          %s155 = scalar_select %p154, %s153, 2
          %s156 = smul.u32 128, %s155
          %p157 = scmp.lt.s32.totalorder %s152, 2
          %s158 = scalar_select %p157, %s152, 2
          %s159 = smul.addr %s158, 8
          %s160 = scalar_lea.vmem %s1, %s159
          %s161 = smul.u32 %s16, 2
          %s162 = sadd.s32 %s161, %s17
          %s163 = smul.u32 2, %s162
          %s164 = ssub.s32 3, %s163
          %p165 = scmp.lt.s32.totalorder %s164, 2
          %s166 = scalar_select %p165, %s164, 2
          %s167 = smul.u32 128, %s166
        $region24: #{tpu_custom_call.1} parent=15 // pred_fallthru
          _
      $region16: #{tpu_custom_call.1} parent=5 // pred_fallthru
        _
      %p168 = scmp.le.s32.totalorder 1, %s9
      %p169 = scmp.lt.s32.totalorder %s9, 3
      %p170 = pnand %p168, %p169
      %p171 = pneg %p170
      // Predicated region
      $region25: #{tpu_custom_call.1} parent=5 // pred_check
        _
      $region26: #{tpu_custom_call.1} parent=5 // pred_check_branch
        %173 = sbr.rel (%p170) target = $region28
      $region27: #{tpu_custom_call.1} parent=5 // pred_region
        %s174 = ssub.s32 %s9, 1
        %s175 = smul.u32 %s18, 2
        %s176 = sadd.s32 %s175, %s19
        %s177 = smul.u32 2, %s176
        %s178 = ssub.s32 3, %s177
        %p179 = scmp.lt.s32.totalorder %s178, 2
        %s180 = scalar_select %p179, %s178, 2
        %s181 = smul.u32 128, %s180
        %p182 = scmp.lt.s32.totalorder %s177, 2
        %s183 = scalar_select %p182, %s177, 2
        %s184 = smul.addr %s183, 8
        %s185 = scalar_lea.vmem %s0, %s184
        %p186 = pneg %p51
        %p187 = pneg %p48
        %s188 = smul.u32 %s18, 2
        %s189 = sadd.s32 %s188, %s19
        %s190 = smul.u32 2, %s189
        %s191 = ssub.s32 3, %s190
        %p192 = scmp.lt.s32.totalorder %s191, 2
        %s193 = scalar_select %p192, %s191, 2
        %s194 = smul.u32 128, %s193
        %p195 = scmp.lt.s32.totalorder %s190, 2
        %s196 = scalar_select %p195, %s190, 2
        %s197 = smul.addr %s196, 8
        %s198 = scalar_lea.vmem %s1, %s197
        %p199 = pneg %p81
        %p200 = pneg %p78
        %p201 = pneg %p107
        %p202 = pneg %p104
        %s203 = smul.u32 %s18, 2
        %s204 = sadd.s32 %s203, %s19
        %s205 = smul.u32 2, %s204
        %s206 = ssub.s32 3, %s205
        %p207 = scmp.lt.s32.totalorder %s206, 2
        %s208 = scalar_select %p207, %s206, 2
        %s209 = smul.u32 128, %s208
        %p210 = scmp.lt.s32.totalorder %s205, 2
        %s211 = scalar_select %p210, %s205, 2
        %s212 = smul.addr %s211, 8
        %s213 = scalar_lea.vmem %s0, %s212
        %s214 = smul.u32 %s18, 2
        %s215 = sadd.s32 %s214, %s19
        %s216 = smul.u32 2, %s215
        %s217 = ssub.s32 3, %s216
        %p218 = scmp.lt.s32.totalorder %s217, 2
        %s219 = scalar_select %p218, %s217, 2
        %s220 = smul.u32 128, %s219
        %s221 = smul.u32 %s18, 2
        %s222 = sadd.s32 %s221, %s19
        %s223 = smul.u32 2, %s222
        %s224 = ssub.s32 3, %s223
        %p225 = scmp.lt.s32.totalorder %s224, 2
        %s226 = scalar_select %p225, %s224, 2
        %s227 = smul.u32 128, %s226
        %p228 = scmp.lt.s32.totalorder %s223, 2
        %s229 = scalar_select %p228, %s223, 2
        %s230 = smul.addr %s229, 8
        %s231 = scalar_lea.vmem %s1, %s230
        %s232 = smul.u32 %s18, 2
        %s233 = sadd.s32 %s232, %s19
        %s234 = smul.u32 2, %s233
        %s235 = ssub.s32 3, %s234
        %p236 = scmp.lt.s32.totalorder %s235, 2
        %s237 = scalar_select %p236, %s235, 2
        %s238 = smul.u32 128, %s237
        %p239 = scmp.eq.s32.totalorder %s19, 0
        // Predicated region
        $region29: #{tpu_custom_call.1} parent=27 // pred_check
          %p240 = pneg %p239
        $region30: #{tpu_custom_call.1} parent=27 // pred_check_branch
          %242 = sbr.rel (%p240) target = $region32
        $region31: #{tpu_custom_call.1} parent=27 // pred_region
          %vm243 = vcmask 0
          %244 = vst.msk [vmem:[#allocation2] sm:$0x1] %vm243, 0.0
        $region32: #{tpu_custom_call.1} parent=27 // pred_fallthru
          _
        %v245 = vld [vmem:[%s213] sm:$0xff]
        %v246 = vld [vmem:[%s213 + $0x8] sm:$0xff]
        %v247 = vld [vmem:[%s231] sm:$0xff]
        %v248 = vld [vmem:[%s231 + $0x8] sm:$0xff]
        %vm249 = vcmask 261120
        %v250 = vsel %vm249, %v245, -inf
        %251 = vmax.xlane.f32.xlu0 %v250
        %v252 = vpop.xlane.xlu0 %251
        %v253 = vsel %vm249, %v246, -inf
        %254 = vmax.xlane.f32.xlu0 %v253
        %v255 = vpop.xlane.xlu0 %254
        %v256 = vsub.f32 %v245, %v252
        %v257 = vsub.f32 %v246, %v255
        %v258 = vmul.f32 %v256, 1.442695
        %v259 = vpow.pop %v258
        %v260 = vmul.f32 %v257, 1.442695
        %v261 = vpow.pop %v260
        %v262 = vsel %vm249, %v259, 0.0
        %263 = vadd.xlane.f32.xlu0 %v262
        %v264 = vpop.xlane.xlu0 %263
        %v265 = vsel %vm249, %v261, 0.0
        %266 = vadd.xlane.f32.xlu0 %v265
        %v267 = vpop.xlane.xlu0 %266
        %v268 = vlaneseq
        %v269 = vand.u32 %v268, 127
        %270 = vset.pattern.permute.xlu0 0
        %271 = vperm.xlu0 %270, %v247
        %v272 = vpop.permute.xlu0 %271
        %273 = vset.pattern.permute.xlu0 0
        %274 = vperm.xlu0 %273, %v248
        %v275 = vpop.permute.xlu0 %274
        %vm276 = vcmp.eq.s32.totalorder %v269, %v272
        %vm277 = vcmp.eq.s32.totalorder %v269, %v275
        %v278 = vsel %vm276, %v256, 0.0
        %v279 = vsel %vm277, %v257, 0.0
        %v280 = vsel %vm249, %v278, 0.0
        %281 = vadd.xlane.f32.xlu0 %v280
        %v282 = vpop.xlane.xlu0 %281
        %v283 = vsel %vm249, %v279, 0.0
        %284 = vadd.xlane.f32.xlu0 %v283
        %v285 = vpop.xlane.xlu0 %284
        %v286 = vlog2.pop %v264
        %v287 = vmul.f32 %v286, 0.6931472
        %v288 = vlog2.pop %v267
        %v289 = vmul.f32 %v288, 0.6931472
        %v290 = vsub.f32 %v287, %v282
        %v291 = vsub.f32 %v289, %v285
        %v292 = vsub.f32 0.0, %v290
        %v293 = vsub.f32 0.0, %v291
        %v294 = vmul.f32 %v292, 1.442695
        %v295 = vpow.pop %v294
        %v296 = vmul.f32 %v293, 1.442695
        %v297 = vpow.pop %v296
        %v298 = vsub.f32 1.0, %v295
        %v299 = vsub.f32 1.0, %v297
        %v300 = vmul.f32 %v298, %v298
        %v301 = vmul.f32 %v299, %v299
        %v302 = vmul.f32 %v300, %v290
        %v303 = vmul.f32 %v301, %v291
        %s304 = smul.u32 %s18, 2
        %s305 = sadd.s32 %s304, %s19
        %s306 = smul.u32 %s305, 16
        %v307 = vlaneseq
        %v308 = vshrl.u32 %v307, 7
        %v309 = vadd.s32 %v308, 8
        %v310 = vstv %s306
        %v311 = vadd.s32 %v310, %v308
        %v312 = vadd.s32 %v310, %v309
        %vm313 = vcmp.lt.s32.totalorder %v311, 20
        %vm314 = vcmp.lt.s32.totalorder %v312, 20
        %v315 = vsel %vm313, %v302, 0.0
        %v316 = vsel %vm314, %v303, 0.0
        %v317 = vld [vmem:[#allocation2] sm:$0x1]
        %vm318 = vcmask 7168
        %v319 = vsel %vm318, %v315, 0.0
        %v320 = vsel %vm318, %v316, 0.0
        %v321 = vadd.f32 %v319, %v320
        %322 = vadd.xlane.f32.xlu0 %v321
        %v323 = vpop.xlane.xlu0 %322
        %v324 = vrot.slane %v323, 4
        %v325 = vadd.f32 %v323, %v324
        %v326 = vrot.slane %v325, 2
        %v327 = vadd.f32 %v325, %v326
        %v328 = vrot.slane %v327, 1
        %v329 = vadd.f32 %v327, %v328
        %s330 = vtos %v329
        %v331 = vstv %s330
        %v332 = vadd.f32 %v317, %v331
        %vm333 = vcmask 0
        %334 = vst.msk [vmem:[#allocation2] sm:$0x1] %vm333, %v332
        // Predicated region
        $region33: #{tpu_custom_call.1} parent=27 // pred_check
          %p335 = pneg %p104
        $region34: #{tpu_custom_call.1} parent=27 // pred_check_branch
          %337 = sbr.rel (%p335) target = $region36
        $region35: #{tpu_custom_call.1} parent=27 // pred_region
          %s339 = ssub.s32 16, 16
          %340 = vsyncadd [#allocation3], %s339
          %s341 = smul.addr %s18, 16
          %s342 = scalar_lea.hbm %s2, %s341
          %s344 = sshll.u32 [#allocation2], 4
          %s345 = int_to_ptr.vmem [resolvable:$true] %s344
          %347 = dma.vmem_to_hbm [thread:$0]  %s345, 16, %s342, [#allocation3]
        $region36: #{tpu_custom_call.1} parent=27 // pred_fallthru
          _
        // Predicated region
        $region37: #{tpu_custom_call.1} parent=27 // pred_check
          %p348 = pneg %p104
        $region38: #{tpu_custom_call.1} parent=27 // pred_check_branch
          %350 = sbr.rel (%p348) target = $region40
        $region39: #{tpu_custom_call.1} parent=27 // pred_region
          %351 = dma.done [#allocation3], 16
        $region40: #{tpu_custom_call.1} parent=27 // pred_fallthru
          _
      $region28: #{tpu_custom_call.1} parent=5 // pred_fallthru
        _
      %p352 = scmp.le.s32.totalorder 2, %s9
      // Predicated region
      $region41: #{tpu_custom_call.1} parent=5 // pred_check
        %p353 = pneg %p352
      $region42: #{tpu_custom_call.1} parent=5 // pred_check_branch
        %355 = sbr.rel (%p353) target = $region44
      $region43: #{tpu_custom_call.1} parent=5 // pred_region
        %s356 = ssub.s32 %s9, 2
      $region44: #{tpu_custom_call.1} parent=5 // pred_fallthru
        _
    $region6: #{tpu_custom_call.1} parent=1 // loop_footer
      %s13 = sadd.s32 1, %s9
    $region7: #{tpu_custom_call.1} parent=1 // loop_footer_branch
      %8 = sbr.rel target = $region3
    $region8: #{tpu_custom_call.1} parent=1 // loop_exit
      _
    %357 = vsyncpa [#allocation3], 1
    %s358 = scalar_lea.sflag [#allocation3], 1
    %359 = vsyncpa %s358, 1

</llo_original>
